<compile_context>
chip_gen: v7x
topology: tpu7x:2x2x1
jax: 0.10.0
libtpu: 0.0.40
codegen_flags: <defaults>
</compile_context>

<pallas_src>
import math

import jax
import jax.numpy as jnp
from jax import lax
from jax.experimental import pallas as pl
from jax.experimental.pallas import tpu as pltpu


def _linear_kernel(x_ref, w_ref, b_ref, o_ref):
    """o = x @ w.T + b in one shot (entire problem resident in VMEM).

    x_ref : (B, K)  bf16 activations
    w_ref : (N, K)  bf16 weight, PyTorch-native layout (lane-dense along K)
    b_ref : (1, N)  f32 bias
    o_ref : (B, N)  f32 output
    """
    acc = lax.dot_general(
        x_ref[...],
        w_ref[...],
        dimension_numbers=(((1,), (1,)), ((), ())),  # contract on K for both
        preferred_element_type=jnp.float32,          # f32 MXU accumulate
    )
    o_ref[...] = (acc + b_ref[...]).astype(o_ref.dtype)


@jax.jit
def pallas_linear(x2d, weight, bias):
    """x2d: (B, K) f32, weight: (N, K) f32 (nn.Linear layout), bias: (N,) -> (B, N) f32."""
    B, K = x2d.shape
    N, K_w = weight.shape
    assert K == K_w, "feature dim mismatch between encoder output and weight"

    # bf16 MXU operands (halves HBM->VMEM bytes); accumulate + epilogue stay f32.
    x_bf = x2d.astype(jnp.bfloat16)
    w_bf = weight.astype(jnp.bfloat16)
    b2d = bias.astype(jnp.float32).reshape(1, N)

    return pl.pallas_call(
        _linear_kernel,
        out_shape=jax.ShapeDtypeStruct((B, N), jnp.float32),
        grid_spec=pltpu.PrefetchScalarGridSpec(
            num_scalar_prefetch=0,
            grid=(1,),  # single block: no reduction grid, no accumulator scratch
            in_specs=[
                pl.BlockSpec((B, K), lambda i: (0, 0)),  # whole x
                pl.BlockSpec((N, K), lambda i: (0, 0)),  # whole weight, native (N, K)
                pl.BlockSpec((1, N), lambda i: (0, 0)),  # bias
            ],
            out_specs=pl.BlockSpec((B, N), lambda i: (0, 0)),
        ),
        compiler_params=pltpu.CompilerParams(
            dimension_semantics=("arbitrary",),
        ),
    )(x_bf, w_bf, b2d)


def encoder(x_nchw):
    """Stand-in encoder: flatten NCHW -> (B, C*H*W)."""
    B = x_nchw.shape[0]
    return x_nchw.reshape(B, -1)


def linear_model_forward(x_nchw, weight, bias):
    """Equivalent of LinearModel.forward: L(encoder(x)).

    weight: (outdim, indim) — PyTorch nn.Linear layout, used as-is (no transpose).
    """
    feats = encoder(x_nchw)                   # (B, indim)
    return pallas_linear(feats, weight, bias)  # (B, outdim)


if __name__ == "__main__":
    indim, outdim = 1024, 10
    B, C, H, W = 2, 4, 16, 16  # C*H*W == 1024 == indim

    key = jax.random.PRNGKey(0)
    kx, kw, kb = jax.random.split(key, 3)

    x = jax.random.normal(kx, (B, C, H, W), dtype=jnp.float32)

    # Deterministic nn.Linear-style init: U(-1/sqrt(indim), 1/sqrt(indim)).
    bound = 1.0 / math.sqrt(indim)
    weight = jax.random.uniform(
        kw, (outdim, indim), dtype=jnp.float32, minval=-bound, maxval=bound
    )
    bias = jax.random.uniform(
        kb, (outdim,), dtype=jnp.float32, minval=-bound, maxval=bound
    )

    out = linear_model_forward(x, weight, bias)
    out = jax.block_until_ready(out)
    assert out.shape == (B, outdim)

    feats = encoder(x)

    # Reference at matching precision (bf16 operands, f32 accumulate).
    ref_bf = (
        feats.astype(jnp.bfloat16).astype(jnp.float32)
        @ weight.astype(jnp.bfloat16).astype(jnp.float32).T
        + bias
    )
    assert jnp.allclose(out, ref_bf, atol=1e-2, rtol=1e-2), "mismatch vs bf16 reference"

    # Sanity check vs full-f32 reference (loose tol covers bf16 operand quantization).
    ref_f32 = feats @ weight.T + bias
    assert jnp.allclose(out, ref_f32, atol=1e-1, rtol=1e-1), "mismatch vs f32 reference"

    print("KERNEL_OK")
</pallas_src>

<mosaic_0001>
module attributes {stable_mosaic.version = 11 : i64} {
  func.func @_linear_kernel(%arg0: i32, %arg1: memref<2x1024xbf16, #tpu.memory_space<vmem>>, %arg2: memref<10x1024xbf16, #tpu.memory_space<vmem>>, %arg3: memref<1x10xf32, #tpu.memory_space<vmem>>, %arg4: memref<2x10xf32, #tpu.memory_space<vmem>>) attributes {dimension_semantics = [#tpu.dimension_semantics<arbitrary>], iteration_bounds = array<i64: 1>, scalar_prefetch = 0 : i64, scratch_operands = 0 : i64, tpu.core_type = #tpu.core_type<tc>, window_params = [{pipeline_mode = #tpu.pipeline_mode<synchronous>, transform_indices = @transform_0, window_bounds = array<i64: 2, 1024>}, {pipeline_mode = #tpu.pipeline_mode<synchronous>, transform_indices = @transform_1, window_bounds = array<i64: 10, 1024>}, {pipeline_mode = #tpu.pipeline_mode<synchronous>, transform_indices = @transform_2, window_bounds = array<i64: 1, 10>}, {pipeline_mode = #tpu.pipeline_mode<synchronous>, transform_indices = @transform_3, window_bounds = array<i64: 2, 10>}]} {
    %c0 = arith.constant 0 : index
    %c0_0 = arith.constant 0 : index
    %0 = vector.load %arg1[%c0, %c0_0] : memref<2x1024xbf16, #tpu.memory_space<vmem>>, vector<2x1024xbf16>
    %c0_1 = arith.constant 0 : index
    %c0_2 = arith.constant 0 : index
    %1 = vector.load %arg2[%c0_1, %c0_2] : memref<10x1024xbf16, #tpu.memory_space<vmem>>, vector<10x1024xbf16>
    %cst = arith.constant dense<0.000000e+00> : vector<2x10xf32>
    %2 = tpu.matmul %0, %1, %cst {dimension_numbers = #tpu.dot_dimension_numbers<[1], [1], [0], [0], [0, 0, 1, 0], [], []>} : vector<2x1024xbf16>, vector<10x1024xbf16>, vector<2x10xf32> -> vector<2x10xf32>
    %c0_3 = arith.constant 0 : index
    %c0_4 = arith.constant 0 : index
    %3 = vector.load %arg3[%c0_3, %c0_4] : memref<1x10xf32, #tpu.memory_space<vmem>>, vector<1x10xf32>
    %4 = vector.broadcast %3 : vector<1x10xf32> to vector<2x10xf32>
    %5 = arith.addf %2, %4 : vector<2x10xf32>
    %c0_5 = arith.constant 0 : index
    %c0_6 = arith.constant 0 : index
    %6 = vector.load %arg4[%c0_5, %c0_6] : memref<2x10xf32, #tpu.memory_space<vmem>>, vector<2x10xf32>
    tpu.vector_store %arg4[%c0_5, %c0_6], %5 {strides = array<i32>} : memref<2x10xf32, #tpu.memory_space<vmem>>, vector<2x10xf32>,
    return
  }
  func.func @transform_0(%arg0: i32) -> (i32, i32) {
    %c0_i32 = arith.constant 0 : i32
    %c0_i32_0 = arith.constant 0 : i32
    %c0_i32_1 = arith.constant 0 : i32
    return %c0_i32, %c0_i32_0 : i32, i32
  }
  func.func @transform_1(%arg0: i32) -> (i32, i32) {
    %c0_i32 = arith.constant 0 : i32
    %c0_i32_0 = arith.constant 0 : i32
    %c0_i32_1 = arith.constant 0 : i32
    return %c0_i32, %c0_i32_0 : i32, i32
  }
  func.func @transform_2(%arg0: i32) -> (i32, i32) {
    %c0_i32 = arith.constant 0 : i32
    %c0_i32_0 = arith.constant 0 : i32
    %c0_i32_1 = arith.constant 0 : i32
    return %c0_i32, %c0_i32_0 : i32, i32
  }
  func.func @transform_3(%arg0: i32) -> (i32, i32) {
    %c0_i32 = arith.constant 0 : i32
    %c0_i32_0 = arith.constant 0 : i32
    %c0_i32_1 = arith.constant 0 : i32
    return %c0_i32, %c0_i32_0 : i32, i32
  }
}

</mosaic_0001>

<llo_original>
// kernel: pallas_linear.1
$region0: #{pallas_linear.1}
  #allocation0 [shape = 'u32[]', space=smem, size = 0x4, offset = 0x4, fixed_abs, tag = 'smem constant byte address 0x4 - core index']
  #allocation1 [shape = 'u32[144,128]{1,0:T(1,128)}', space=vmem, size = 0x12000, scoped, tag = 'internal scratch']
  %s0 = inlined_call_operand.vmem [shape: bf16[2,1024], index: 0, kind: input, shape index: {}]
  %s1 = inlined_call_operand.vmem [shape: bf16[10,1024], index: 1, kind: input, shape index: {}]
  %s2 = inlined_call_operand.vmem [shape: f32[1,10], index: 2, kind: input, shape index: {}]
  %s3 = inlined_call_operand.hbm [shape: f32[2,10], index: 3, kind: output, shape index: {}]
  %s4 = sld [smem:[#allocation0]]
  $region22: #{pallas_linear.1} parent=0
    _
  %s6 = ssub.s32 1, %s4
  %s7 = scalar_select 0, %s6, %s4
  $region1: #{pallas_linear.1} parent=0
    #allocation2 [shape = 'u8[1024]{0}', space=vmem, size = 0x400, scoped, tag = 'output window, operand 0, single buffered']
    #allocation3 [shape = 's32[1]{0}', space=sflag, size = 0x4, scoped, tag = 'scoped memory for pallas_linear.1']
    %8 = vsyncpa [#allocation3], 0
    // Predicated region
    $region2: #{pallas_linear.1} parent=1 // pred_check
      _
    $region3: #{pallas_linear.1} parent=1 // pred_check_branch
      %10 = sbr.rel (0) target = $region5
    $region4: #{pallas_linear.1} parent=1 // pred_region
      _
    $region5: #{pallas_linear.1} parent=1 // pred_fallthru
      _
    // Predicated region
    $region6: #{pallas_linear.1} parent=1 // pred_check
      _
    $region7: #{pallas_linear.1} parent=1 // pred_check_branch
      %12 = sbr.rel (0) target = $region9
    $region8: #{pallas_linear.1} parent=1 // pred_region
      _
    $region9: #{pallas_linear.1} parent=1 // pred_fallthru
      _
    // Predicated region
    $region10: #{pallas_linear.1} parent=1 // pred_check
      _
    $region11: #{pallas_linear.1} parent=1 // pred_check_branch
      %14 = sbr.rel (0) target = $region13
    $region12: #{pallas_linear.1} parent=1 // pred_region
      _
    $region13: #{pallas_linear.1} parent=1 // pred_fallthru
      _
    %v16 = vld [vmem:[%s0] sm:$0xff]
    %v17 = vld [vmem:[%s1] sm:$0xff]
    %v18 = vld [vmem:[%s1 + $0x8] sm:$0xff]
    %v19 = vld [vmem:[%s1 + $0x10] sm:$0xff]
    %v20 = vld [vmem:[%s1 + $0x18] sm:$0xff]
    %v21 = vld [vmem:[%s1 + $0x20] sm:$0x11]
    %v22 = vld [vmem:[%s1 + $0x28] sm:$0x11]
    %v23 = vld [vmem:[%s1 + $0x30] sm:$0x11]
    %v24 = vld [vmem:[%s1 + $0x38] sm:$0x11]
    %v25 = vld [vmem:[%s2] sm:$0x1]
    %v27 = vlaneseq
    %v28 = vshrl.u32 %v27, 7
    %v29 = vsub.s32 0, %v28
    %v30 = vrot.slane %v25, %v29
    %v33 = vcombine.high %v16, %v16
    %v35 = vunpack.c.l.s4 1966171168
    %v36 = vunpack.c.0.s8 %v35
    %v37 = vlaneseq
    %v38 = vshrl.u32 %v37, 7
    %v39 = vsub.s32 %v36, %v38
    %v40 = vrot.slane %v16, %v39
    %v42 = vunpack.c.l.s4 1966171168
    %v43 = vunpack.c.0.s8 %v42
    %v44 = vlaneseq
    %v45 = vshrl.u32 %v44, 7
    %v46 = vsub.s32 %v43, %v45
    %v47 = vrot.slane %v33, %v46
    %v48 = vcombine.high %v40, %v40
    %v49 = vcombine.high %v47, %v47
    %v51 = vunpack.c.l.s4 1966171168
    %v52 = vunpack.c.0.s8 %v51
    %v53 = vlaneseq
    %v54 = vshrl.u32 %v53, 7
    %v55 = vsub.s32 %v52, %v54
    %v56 = vrot.slane %v40, %v55
    %v58 = vunpack.c.l.s4 1966171168
    %v59 = vunpack.c.0.s8 %v58
    %v60 = vlaneseq
    %v61 = vshrl.u32 %v60, 7
    %v62 = vsub.s32 %v59, %v61
    %v63 = vrot.slane %v47, %v62
    %v65 = vunpack.c.l.s4 1966171168
    %v66 = vunpack.c.0.s8 %v65
    %v67 = vlaneseq
    %v68 = vshrl.u32 %v67, 7
    %v69 = vsub.s32 %v66, %v68
    %v70 = vrot.slane %v48, %v69
    %v72 = vunpack.c.l.s4 1966171168
    %v73 = vunpack.c.0.s8 %v72
    %v74 = vlaneseq
    %v75 = vshrl.u32 %v74, 7
    %v76 = vsub.s32 %v73, %v75
    %v77 = vrot.slane %v49, %v76
    %v78 = vcombine.high %v56, %v56
    %v79 = vcombine.high %v63, %v63
    %v80 = vcombine.high %v70, %v70
    %v81 = vcombine.high %v77, %v77
    %v98 = vunpack.c.l.b16 %v17
    %v99 = vunpack.c.h.b16 %v17
    %v100 = vunpack.c.l.b16 %v18
    %v101 = vunpack.c.h.b16 %v18
    %v102 = vunpack.c.l.b16 %v19
    %v103 = vunpack.c.h.b16 %v19
    %v104 = vunpack.c.l.b16 %v20
    %v105 = vunpack.c.h.b16 %v20
    %v106 = vunpack.c.l.b16 %v21
    %v107 = vunpack.c.h.b16 %v21
    %v108 = vunpack.c.l.b16 %v22
    %v109 = vunpack.c.h.b16 %v22
    %v110 = vunpack.c.l.b16 %v23
    %v111 = vunpack.c.h.b16 %v23
    %v112 = vunpack.c.l.b16 %v24
    %v113 = vunpack.c.h.b16 %v24
    %v114 = vpack.c.b16 %v106, %v98
    %v115 = vpack.c.b16 %v107, %v99
    %v116 = vpack.c.b16 %v108, %v100
    %v117 = vpack.c.b16 %v109, %v101
    %v118 = vpack.c.b16 %v110, %v102
    %v119 = vpack.c.b16 %v111, %v103
    %v120 = vpack.c.b16 %v112, %v104
    %v121 = vpack.c.b16 %v113, %v105
    %130 = vmatprep.subr.bf16.mxu0 %v115
    %131 = vmatpush1.bf16.xpose.msra.mxu0 %v114
    %132 = vmatprep.subr.bf16.mxu0 0
    %133 = vmatpush1.bf16.xpose.msra.mxu0 0
    %134 = vmatprep.subr.bf16.mxu0 0
    %135 = vmatpush1.bf16.xpose.msra.mxu0 0
    %136 = vmatprep.subr.bf16.mxu0 0
    %137 = vmatpush1.bf16.xpose.msra.mxu0 0
    %138 = vmatprep.subr.bf16.mxu0 0
    %139 = vmatpush1.bf16.xpose.msra.mxu0 0
    %140 = vmatprep.subr.bf16.mxu0 0
    %141 = vmatpush1.bf16.xpose.msra.mxu0 0
    %142 = vmatprep.subr.bf16.mxu0 0
    %143 = vmatpush1.bf16.xpose.msra.mxu0 0
    %144 = vmatprep.subr.bf16.mxu0 0
    %145 = vmatpush1.bf16.xpose.msra.mxu0 0
    %146 = vmatprep.subr.bf16.mxu0 0
    %147 = vmatpush1.bf16.xpose.msra.mxu0 0
    %148 = vmatprep.subr.bf16.mxu0 0
    %149 = vmatpush1.bf16.xpose.msra.mxu0 0
    %150 = vmatprep.subr.bf16.mxu0 0
    %151 = vmatpush1.bf16.xpose.msra.mxu0 0
    %152 = vmatprep.subr.bf16.mxu0 0
    %153 = vmatpush1.bf16.xpose.msra.mxu0 0
    %154 = vmatprep.subr.bf16.mxu0 0
    %155 = vmatpush1.bf16.xpose.msra.mxu0 0
    %156 = vmatprep.subr.bf16.mxu0 0
    %157 = vmatpush1.bf16.xpose.msra.mxu0 0
    %158 = vmatprep.subr.bf16.mxu0 0
    %159 = vmatpush1.bf16.xpose.msra.mxu0 0
    %160 = vmatprep.subr.bf16.mxu0 0
    %161 = vmatpush1.bf16.xpose.msra.mxu0 0
    %162 = vmatprep.mubr.bf16.mxu0 %v70
    %163 = vmatmul.mubr.bf16.gmra.mrb[0].mxu0 %v56
    %v164 = vpop.f32.mrb[0].mxu0
    %v165 = vadd.f32 %v30, %v164
    %v166 = vpop.f32.mrb[0].mxu0
    %v167 = vpop.f32.mrb[0].mxu0
    %v168 = vpop.f32.mrb[0].mxu0
    %169 = vdwg.mxu0
    %170 = vmatprep.subr.bf16.mxu0 %v117
    %171 = vmatpush1.bf16.xpose.msra.mxu0 %v116
    %172 = vmatprep.subr.bf16.mxu0 0
    %173 = vmatpush1.bf16.xpose.msra.mxu0 0
    %174 = vmatprep.subr.bf16.mxu0 0
    %175 = vmatpush1.bf16.xpose.msra.mxu0 0
    %176 = vmatprep.subr.bf16.mxu0 0
    %177 = vmatpush1.bf16.xpose.msra.mxu0 0
    %178 = vmatprep.subr.bf16.mxu0 0
    %179 = vmatpush1.bf16.xpose.msra.mxu0 0
    %180 = vmatprep.subr.bf16.mxu0 0
    %181 = vmatpush1.bf16.xpose.msra.mxu0 0
    %182 = vmatprep.subr.bf16.mxu0 0
    %183 = vmatpush1.bf16.xpose.msra.mxu0 0
    %184 = vmatprep.subr.bf16.mxu0 0
    %185 = vmatpush1.bf16.xpose.msra.mxu0 0
    %186 = vmatprep.subr.bf16.mxu0 0
    %187 = vmatpush1.bf16.xpose.msra.mxu0 0
    %188 = vmatprep.subr.bf16.mxu0 0
    %189 = vmatpush1.bf16.xpose.msra.mxu0 0
    %190 = vmatprep.subr.bf16.mxu0 0
    %191 = vmatpush1.bf16.xpose.msra.mxu0 0
    %192 = vmatprep.subr.bf16.mxu0 0
    %193 = vmatpush1.bf16.xpose.msra.mxu0 0
    %194 = vmatprep.subr.bf16.mxu0 0
    %195 = vmatpush1.bf16.xpose.msra.mxu0 0
    %196 = vmatprep.subr.bf16.mxu0 0
    %197 = vmatpush1.bf16.xpose.msra.mxu0 0
    %198 = vmatprep.subr.bf16.mxu0 0
    %199 = vmatpush1.bf16.xpose.msra.mxu0 0
    %200 = vmatprep.subr.bf16.mxu0 0
    %201 = vmatpush1.bf16.xpose.msra.mxu0 0
    %202 = vmatprep.mubr.bf16.mxu0 %v80
    %203 = vmatmul.mubr.bf16.gmra.mrb[0].mxu0 %v78
    %v204 = vpop.f32.mrb[0].mxu0
    %v205 = vadd.f32 %v165, %v204
    %v206 = vpop.f32.mrb[0].mxu0
    %v207 = vpop.f32.mrb[0].mxu0
    %v208 = vpop.f32.mrb[0].mxu0
    %209 = vdwg.mxu0
    %210 = vmatprep.subr.bf16.mxu0 %v119
    %211 = vmatpush1.bf16.xpose.msra.mxu0 %v118
    %212 = vmatprep.subr.bf16.mxu0 0
    %213 = vmatpush1.bf16.xpose.msra.mxu0 0
    %214 = vmatprep.subr.bf16.mxu0 0
    %215 = vmatpush1.bf16.xpose.msra.mxu0 0
    %216 = vmatprep.subr.bf16.mxu0 0
    %217 = vmatpush1.bf16.xpose.msra.mxu0 0
    %218 = vmatprep.subr.bf16.mxu0 0
    %219 = vmatpush1.bf16.xpose.msra.mxu0 0
    %220 = vmatprep.subr.bf16.mxu0 0
    %221 = vmatpush1.bf16.xpose.msra.mxu0 0
    %222 = vmatprep.subr.bf16.mxu0 0
    %223 = vmatpush1.bf16.xpose.msra.mxu0 0
    %224 = vmatprep.subr.bf16.mxu0 0
    %225 = vmatpush1.bf16.xpose.msra.mxu0 0
    %226 = vmatprep.subr.bf16.mxu0 0
    %227 = vmatpush1.bf16.xpose.msra.mxu0 0
    %228 = vmatprep.subr.bf16.mxu0 0
    %229 = vmatpush1.bf16.xpose.msra.mxu0 0
    %230 = vmatprep.subr.bf16.mxu0 0
    %231 = vmatpush1.bf16.xpose.msra.mxu0 0
    %232 = vmatprep.subr.bf16.mxu0 0
    %233 = vmatpush1.bf16.xpose.msra.mxu0 0
    %234 = vmatprep.subr.bf16.mxu0 0
    %235 = vmatpush1.bf16.xpose.msra.mxu0 0
    %236 = vmatprep.subr.bf16.mxu0 0
    %237 = vmatpush1.bf16.xpose.msra.mxu0 0
    %238 = vmatprep.subr.bf16.mxu0 0
    %239 = vmatpush1.bf16.xpose.msra.mxu0 0
    %240 = vmatprep.subr.bf16.mxu0 0
    %241 = vmatpush1.bf16.xpose.msra.mxu0 0
    %242 = vmatprep.mubr.bf16.mxu0 %v77
    %243 = vmatmul.mubr.bf16.gmra.mrb[0].mxu0 %v63
    %v244 = vpop.f32.mrb[0].mxu0
    %v245 = vadd.f32 %v205, %v244
    %v246 = vpop.f32.mrb[0].mxu0
    %v247 = vpop.f32.mrb[0].mxu0
    %v248 = vpop.f32.mrb[0].mxu0
    %249 = vdwg.mxu0
    %250 = vmatprep.subr.bf16.mxu0 %v121
    %251 = vmatpush1.bf16.xpose.msra.mxu0 %v120
    %252 = vmatprep.subr.bf16.mxu0 0
    %253 = vmatpush1.bf16.xpose.msra.mxu0 0
    %254 = vmatprep.subr.bf16.mxu0 0
    %255 = vmatpush1.bf16.xpose.msra.mxu0 0
    %256 = vmatprep.subr.bf16.mxu0 0
    %257 = vmatpush1.bf16.xpose.msra.mxu0 0
    %258 = vmatprep.subr.bf16.mxu0 0
    %259 = vmatpush1.bf16.xpose.msra.mxu0 0
    %260 = vmatprep.subr.bf16.mxu0 0
    %261 = vmatpush1.bf16.xpose.msra.mxu0 0
    %262 = vmatprep.subr.bf16.mxu0 0
    %263 = vmatpush1.bf16.xpose.msra.mxu0 0
    %264 = vmatprep.subr.bf16.mxu0 0
    %265 = vmatpush1.bf16.xpose.msra.mxu0 0
    %266 = vmatprep.subr.bf16.mxu0 0
    %267 = vmatpush1.bf16.xpose.msra.mxu0 0
    %268 = vmatprep.subr.bf16.mxu0 0
    %269 = vmatpush1.bf16.xpose.msra.mxu0 0
    %270 = vmatprep.subr.bf16.mxu0 0
    %271 = vmatpush1.bf16.xpose.msra.mxu0 0
    %272 = vmatprep.subr.bf16.mxu0 0
    %273 = vmatpush1.bf16.xpose.msra.mxu0 0
    %274 = vmatprep.subr.bf16.mxu0 0
    %275 = vmatpush1.bf16.xpose.msra.mxu0 0
    %276 = vmatprep.subr.bf16.mxu0 0
    %277 = vmatpush1.bf16.xpose.msra.mxu0 0
    %278 = vmatprep.subr.bf16.mxu0 0
    %279 = vmatpush1.bf16.xpose.msra.mxu0 0
    %280 = vmatprep.subr.bf16.mxu0 0
    %281 = vmatpush1.bf16.xpose.msra.mxu0 0
    %282 = vmatprep.mubr.bf16.mxu0 %v81
    %283 = vmatmul.mubr.bf16.gmra.mrb[0].mxu0 %v79
    %v284 = vpop.f32.mrb[0].mxu0
    %v285 = vadd.f32 %v245, %v284
    %v286 = vpop.f32.mrb[0].mxu0
    %v287 = vpop.f32.mrb[0].mxu0
    %v288 = vpop.f32.mrb[0].mxu0
    %289 = vdwg.mxu0
    %vm290 = vcmask 74752
    %291 = vst.msk [vmem:[#allocation2] sm:$0x3] %vm290, %v285
    // Predicated region
    $region14: #{pallas_linear.1} parent=1 // pred_check
      _
    $region15: #{pallas_linear.1} parent=1 // pred_check_branch
      %293 = sbr.rel (0) target = $region17
    $region16: #{pallas_linear.1} parent=1 // pred_region
      %s295 = ssub.s32 32, 32
      %296 = vsyncadd [#allocation3], %s295
      %s298 = sshll.u32 [#allocation2], 4
      %s299 = int_to_ptr.vmem [resolvable:$true] %s298
      %301 = dma.vmem_to_hbm [thread:$0]  %s299, 32, %s3, [#allocation3]
    $region17: #{pallas_linear.1} parent=1 // pred_fallthru
      _
    // Predicated region
    $region18: #{pallas_linear.1} parent=1 // pred_check
      _
    $region19: #{pallas_linear.1} parent=1 // pred_check_branch
      %303 = sbr.rel (0) target = $region21
    $region20: #{pallas_linear.1} parent=1 // pred_region
      %304 = dma.done [#allocation3], 32
    $region21: #{pallas_linear.1} parent=1 // pred_fallthru
      _
    %305 = vsyncpa [#allocation3], 1

</llo_original>
